<compile_context>
chip_gen: v6e
topology: v6e:2x2x1
jax: 0.10.0
libtpu: 0.0.40
codegen_flags: <defaults>
</compile_context>

<pallas_src>
import functools

import jax
import jax.numpy as jnp
import numpy as np
from jax.experimental import pallas as pl
from jax.experimental.pallas import tpu as pltpu

# ----------------------------- config ---------------------------------------
D_MODEL = 32
D_FF = 64
LN_EPS = 1e-5

BATCH = 2
SEQ = 8


# ----------------------------- fused FFN kernel ------------------------------
def _ffn_kernel(x_ref, w1_ref, w2_ref, p_ref, o_ref, *, eps, d_model, d_ff,
                matmul_dtype):
    """h = relu(x@W1+b1); y = h@W2+b2 + x; out = LayerNorm(y)."""
    x = x_ref[...]                                   # [tm, D]  f32
    p = p_ref[...]                                   # [4, P]   f32 (packed params)
    b1 = p[0:1, :d_ff]                               # [1, Dff]
    b2 = p[1:2, :d_model]                            # [1, D]
    gamma = p[2:3, :d_model]                         # [1, D]
    beta = p[3:4, :d_model]                          # [1, D]

    # Linear 1 + ReLU (MXU matmul, f32 accumulate; cast around dot only).
    h = jnp.dot(x.astype(matmul_dtype), w1_ref[...],
                preferred_element_type=jnp.float32)
    h = jnp.maximum(h + b1, 0.0)                     # [tm, Dff] f32

    # Linear 2 + (dropout == identity at inference) + residual add, all f32.
    y = jnp.dot(h.astype(matmul_dtype), w2_ref[...],
                preferred_element_type=jnp.float32)
    y = y + b2 + x                                   # [tm, D] f32

    # LayerNorm over the feature dim: one-pass moments (biased variance, f32),
    # matching torch.nn.LayerNorm.
    inv_d = 1.0 / d_model
    s1 = jnp.sum(y, axis=-1, keepdims=True)
    s2 = jnp.sum(y * y, axis=-1, keepdims=True)
    mean = s1 * inv_d
    var = s2 * inv_d - mean * mean
    o_ref[...] = (y - mean) * jax.lax.rsqrt(var + eps) * gamma + beta


def feedforward_network(x, w1, b1, w2, b2, gamma, beta, *, block_rows=None,
                        matmul_dtype=jnp.float32):
    """Fused FFN sub-block.

    x:          [B, S, d_model] float32
    w1 / b1:    [d_model, d_ff] / [d_ff]
    w2 / b2:    [d_ff, d_model] / [d_model]
    gamma/beta: [d_model] LayerNorm affine params
    returns     [B, S, d_model] float32

    block_rows:   None (default) = whole slab in one grid step (right choice at
                  tiny sizes -- overhead bound); for scaled M pass a multiple of
                  8 yielding >=2 steps so v7x's second TensorCore gets work.
    matmul_dtype: jnp.float32 (default) or jnp.bfloat16 (v6e/v7x scaled configs;
                  elementwise math stays f32 either way).
    """
    B, S, D = x.shape
    Dff = w1.shape[1]
    M = B * S
    x2d = x.reshape(M, D)

    if block_rows is None:
        block_rows = M
    assert M % block_rows == 0, "rows must divide evenly into row tiles"
    assert block_rows == M or block_rows % 8 == 0, "row tile must be a multiple of 8"
    grid_steps = M // block_rows
    grid = (grid_steps,)

    # Pack the four small parameter vectors into ONE (4, P) slab -> single DMA.
    P = max(D, Dff)
    params = jnp.zeros((4, P), jnp.float32)
    params = params.at[0, :Dff].set(b1.astype(jnp.float32))
    params = params.at[1, :D].set(b2.astype(jnp.float32))
    params = params.at[2, :D].set(gamma.astype(jnp.float32))
    params = params.at[3, :D].set(beta.astype(jnp.float32))

    # Pre-cast weights for the matmul dtype (halves weight DMA bytes for bf16).
    w1c = w1.astype(matmul_dtype)
    w2c = w2.astype(matmul_dtype)

    # Constant-index (weight / param) specs: when the grid has >1 step, disable
    # double-buffering of these static operands (VMEM savings on v7x).
    def _const_spec(shape):
        if grid_steps > 1:
            return pl.BlockSpec(shape, lambda i: (0, 0),
                                pipeline_mode=pl.Buffered(1))
        return pl.BlockSpec(shape, lambda i: (0, 0))

    itemsize = jnp.dtype(matmul_dtype).itemsize
    cost = pl.CostEstimate(
        flops=2 * 2 * M * D * Dff,                 # two matmuls
        transcendentals=M,                          # one rsqrt per row
        bytes_accessed=(x2d.size * 4 + (w1.size + w2.size) * itemsize
                        + params.size * 4 + M * D * 4),
    )

    kern = functools.partial(_ffn_kernel, eps=LN_EPS, d_model=D, d_ff=Dff,
                             matmul_dtype=matmul_dtype)
    out2d = pl.pallas_call(
        kern,
        grid=grid,
        in_specs=[
            pl.BlockSpec((block_rows, D), lambda i: (i, 0)),   # x row tile
            _const_spec((D, Dff)),                             # W1 (resident)
            _const_spec((Dff, D)),                             # W2 (resident)
            _const_spec((4, P)),                               # packed b1/b2/g/beta
        ],
        out_specs=pl.BlockSpec((block_rows, D), lambda i: (i, 0)),
        out_shape=jax.ShapeDtypeStruct((M, D), jnp.float32),
        compiler_params=pltpu.CompilerParams(
            dimension_semantics=("parallel",)),
        cost_estimate=cost,
    )(x2d, w1c, w2c, params)
    return out2d.reshape(B, S, D)


# ----------------------------- pure-JAX reference ----------------------------
def _ffn_reference(x, w1, b1, w2, b2, gamma, beta):
    h = jnp.maximum(x @ w1 + b1, 0.0)
    y = h @ w2 + b2 + x
    mean = jnp.mean(y, axis=-1, keepdims=True)
    var = jnp.mean((y - mean) ** 2, axis=-1, keepdims=True)
    return (y - mean) * jax.lax.rsqrt(var + LN_EPS) * gamma + beta


# ----------------------------- parameter init --------------------------------
def _init_linear(key, in_f, out_f):
    # matches torch.nn.Linear default init: U(-1/sqrt(in), 1/sqrt(in))
    k1, k2 = jax.random.split(key)
    bound = 1.0 / np.sqrt(in_f)
    w = jax.random.uniform(k1, (in_f, out_f), jnp.float32, -bound, bound)
    b = jax.random.uniform(k2, (out_f,), jnp.float32, -bound, bound)
    return w, b


# ----------------------------- main ------------------------------------------
if __name__ == "__main__":
    root = jax.random.PRNGKey(0)
    kx, k1, k2 = jax.random.split(root, 3)

    x = jax.random.normal(kx, (BATCH, SEQ, D_MODEL), jnp.float32)
    w1, b1 = _init_linear(k1, D_MODEL, D_FF)
    w2, b2 = _init_linear(k2, D_FF, D_MODEL)
    gamma = jnp.ones((D_MODEL,), jnp.float32)
    beta = jnp.zeros((D_MODEL,), jnp.float32)

    fwd = jax.jit(feedforward_network)
    out = fwd(x, w1, b1, w2, b2, gamma, beta)
    out = jax.block_until_ready(out)

    # correctness vs. pure-JAX reference of the PyTorch forward (eval mode)
    ref = _ffn_reference(x, w1, b1, w2, b2, gamma, beta)
    assert out.shape == (BATCH, SEQ, D_MODEL)
    assert bool(jnp.all(jnp.isfinite(out)))
    np.testing.assert_allclose(np.asarray(out), np.asarray(ref), atol=1e-5, rtol=1e-5)

    print("KERNEL_OK")
</pallas_src>

<mosaic_0001>
module attributes {stable_mosaic.version = 11 : i64} {
  func.func @_ffn_kernel(%arg0: i32, %arg1: memref<16x32xf32, #tpu.memory_space<vmem>>, %arg2: memref<32x64xf32, #tpu.memory_space<vmem>>, %arg3: memref<64x32xf32, #tpu.memory_space<vmem>>, %arg4: memref<4x64xf32, #tpu.memory_space<vmem>>, %arg5: memref<16x32xf32, #tpu.memory_space<vmem>>) attributes {dimension_semantics = [#tpu.dimension_semantics<parallel>], iteration_bounds = array<i64: 1>, scalar_prefetch = 0 : i64, scratch_operands = 0 : i64, tpu.core_type = #tpu.core_type<tc>, window_params = [{transform_indices = @transform_0, window_bounds = array<i64: 16, 32>}, {pipeline_mode = #tpu.pipeline_mode<synchronous>, transform_indices = @transform_1, window_bounds = array<i64: 32, 64>}, {pipeline_mode = #tpu.pipeline_mode<synchronous>, transform_indices = @transform_2, window_bounds = array<i64: 64, 32>}, {pipeline_mode = #tpu.pipeline_mode<synchronous>, transform_indices = @transform_3, window_bounds = array<i64: 4, 64>}, {transform_indices = @transform_4, window_bounds = array<i64: 16, 32>}]} {
    %c0 = arith.constant 0 : index
    %c0_0 = arith.constant 0 : index
    %0 = vector.load %arg1[%c0, %c0_0] : memref<16x32xf32, #tpu.memory_space<vmem>>, vector<16x32xf32>
    %c0_1 = arith.constant 0 : index
    %c0_2 = arith.constant 0 : index
    %1 = vector.load %arg4[%c0_1, %c0_2] : memref<4x64xf32, #tpu.memory_space<vmem>>, vector<4x64xf32>
    %2 = vector.extract_strided_slice %1 {offsets = [0, 0], sizes = [1, 64], strides = [1, 1]} : vector<4x64xf32> to vector<1x64xf32>
    %3 = vector.extract_strided_slice %1 {offsets = [1, 0], sizes = [1, 32], strides = [1, 1]} : vector<4x64xf32> to vector<1x32xf32>
    %4 = vector.extract_strided_slice %1 {offsets = [2, 0], sizes = [1, 32], strides = [1, 1]} : vector<4x64xf32> to vector<1x32xf32>
    %5 = vector.extract_strided_slice %1 {offsets = [3, 0], sizes = [1, 32], strides = [1, 1]} : vector<4x64xf32> to vector<1x32xf32>
    %c0_3 = arith.constant 0 : index
    %c0_4 = arith.constant 0 : index
    %6 = vector.load %arg2[%c0_3, %c0_4] : memref<32x64xf32, #tpu.memory_space<vmem>>, vector<32x64xf32>
    %cst = arith.constant dense<0.000000e+00> : vector<16x64xf32>
    %7 = tpu.matmul %0, %6, %cst {dimension_numbers = #tpu.dot_dimension_numbers<[1], [0], [0], [1], [0, 0, 1, 1], [], []>} : vector<16x32xf32>, vector<32x64xf32>, vector<16x64xf32> -> vector<16x64xf32>
    %8 = vector.broadcast %2 : vector<1x64xf32> to vector<16x64xf32>
    %9 = arith.addf %7, %8 : vector<16x64xf32>
    %cst_5 = arith.constant 0.000000e+00 : f32
    %10 = vector.broadcast %cst_5 : f32 to vector<16x64xf32>
    %11 = arith.maximumf %9, %10 : vector<16x64xf32>
    %c0_6 = arith.constant 0 : index
    %c0_7 = arith.constant 0 : index
    %12 = vector.load %arg3[%c0_6, %c0_7] : memref<64x32xf32, #tpu.memory_space<vmem>>, vector<64x32xf32>
    %cst_8 = arith.constant dense<0.000000e+00> : vector<16x32xf32>
    %13 = tpu.matmul %11, %12, %cst_8 {dimension_numbers = #tpu.dot_dimension_numbers<[1], [0], [0], [1], [0, 0, 1, 1], [], []>} : vector<16x64xf32>, vector<64x32xf32>, vector<16x32xf32> -> vector<16x32xf32>
    %14 = vector.broadcast %3 : vector<1x32xf32> to vector<16x32xf32>
    %15 = arith.addf %13, %14 : vector<16x32xf32>
    %16 = arith.addf %15, %0 : vector<16x32xf32>
    %cst_9 = arith.constant dense<0.000000e+00> : vector<16xf32>
    %17 = vector.multi_reduction <add>, %16, %cst_9 [1] : vector<16x32xf32> to vector<16xf32>
    %18 = vector.shape_cast %17 : vector<16xf32> to vector<16x1xf32>
    %19 = arith.mulf %16, %16 : vector<16x32xf32>
    %cst_10 = arith.constant dense<0.000000e+00> : vector<16xf32>
    %20 = vector.multi_reduction <add>, %19, %cst_10 [1] : vector<16x32xf32> to vector<16xf32>
    %21 = vector.shape_cast %20 : vector<16xf32> to vector<16x1xf32>
    %cst_11 = arith.constant 3.125000e-02 : f32
    %22 = vector.broadcast %cst_11 : f32 to vector<16x1xf32>
    %23 = arith.mulf %18, %22 : vector<16x1xf32>
    %cst_12 = arith.constant 3.125000e-02 : f32
    %24 = vector.broadcast %cst_12 : f32 to vector<16x1xf32>
    %25 = arith.mulf %21, %24 : vector<16x1xf32>
    %26 = arith.mulf %23, %23 : vector<16x1xf32>
    %27 = arith.subf %25, %26 : vector<16x1xf32>
    %28 = vector.broadcast %23 : vector<16x1xf32> to vector<16x32xf32>
    %29 = arith.subf %16, %28 : vector<16x32xf32>
    %cst_13 = arith.constant 9.99999974E-6 : f32
    %30 = vector.broadcast %cst_13 : f32 to vector<16x1xf32>
    %31 = arith.addf %27, %30 : vector<16x1xf32>
    %32 = math.rsqrt %31 : vector<16x1xf32>
    %33 = vector.broadcast %32 : vector<16x1xf32> to vector<16x32xf32>
    %34 = arith.mulf %29, %33 : vector<16x32xf32>
    %35 = vector.broadcast %4 : vector<1x32xf32> to vector<16x32xf32>
    %36 = arith.mulf %34, %35 : vector<16x32xf32>
    %37 = vector.broadcast %5 : vector<1x32xf32> to vector<16x32xf32>
    %38 = arith.addf %36, %37 : vector<16x32xf32>
    %c0_14 = arith.constant 0 : index
    %c0_15 = arith.constant 0 : index
    %39 = vector.load %arg5[%c0_14, %c0_15] : memref<16x32xf32, #tpu.memory_space<vmem>>, vector<16x32xf32>
    tpu.vector_store %arg5[%c0_14, %c0_15], %38 {strides = array<i32>} : memref<16x32xf32, #tpu.memory_space<vmem>>, vector<16x32xf32>,
    return
  }
  func.func @transform_0(%arg0: i32) -> (i32, i32) {
    %c0_i32 = arith.constant 0 : i32
    %c0_i32_0 = arith.constant 0 : i32
    return %arg0, %c0_i32 : i32, i32
  }
  func.func @transform_1(%arg0: i32) -> (i32, i32) {
    %c0_i32 = arith.constant 0 : i32
    %c0_i32_0 = arith.constant 0 : i32
    %c0_i32_1 = arith.constant 0 : i32
    return %c0_i32, %c0_i32_0 : i32, i32
  }
  func.func @transform_2(%arg0: i32) -> (i32, i32) {
    %c0_i32 = arith.constant 0 : i32
    %c0_i32_0 = arith.constant 0 : i32
    %c0_i32_1 = arith.constant 0 : i32
    return %c0_i32, %c0_i32_0 : i32, i32
  }
  func.func @transform_3(%arg0: i32) -> (i32, i32) {
    %c0_i32 = arith.constant 0 : i32
    %c0_i32_0 = arith.constant 0 : i32
    %c0_i32_1 = arith.constant 0 : i32
    return %c0_i32, %c0_i32_0 : i32, i32
  }
  func.func @transform_4(%arg0: i32) -> (i32, i32) {
    %c0_i32 = arith.constant 0 : i32
    %c0_i32_0 = arith.constant 0 : i32
    return %arg0, %c0_i32 : i32, i32
  }
}

</mosaic_0001>

<llo_original>
// kernel: feedforward_network.1
$region0: #{feedforward_network.1}
  #allocation0 [shape = 'u32[]', space=smem, size = 0x4, offset = 0x4, fixed_abs, tag = 'smem constant byte address 0x4 - core index']
  #allocation1 [shape = 'u32[144,128]{1,0:T(1,128)}', space=vmem, size = 0x12000, scoped, tag = 'internal scratch']
  %s0 = inlined_call_operand.vmem [shape: f32[16,32], index: 0, kind: input, shape index: {}]
  %s1 = inlined_call_operand.vmem [shape: f32[32,64], index: 1, kind: input, shape index: {}]
  %s2 = inlined_call_operand.vmem [shape: f32[64,32], index: 2, kind: input, shape index: {}]
  %s3 = inlined_call_operand.vmem [shape: f32[4,64], index: 3, kind: input, shape index: {}]
  %s4 = inlined_call_operand.hbm [shape: f32[16,32], index: 4, kind: output, shape index: {}]
  %s5 = sld [smem:[#allocation0]]
  $region26: #{feedforward_network.1} parent=0
    _
  %s7 = ssub.s32 1, %s5
  %s8 = scalar_select 0, %s7, %s5
  $region1: #{feedforward_network.1} parent=0
    #allocation2 [shape = 'u8[8192]{0}', space=vmem, size = 0x2000, scoped, tag = 'output window, operand 0, single buffered']
    #allocation3 [shape = 's32[1]{0}', space=sflag, size = 0x4, scoped, tag = 'scoped memory for feedforward_network.1']
    %9 = vsyncpa [#allocation3], 0
    // Predicated region
    $region2: #{feedforward_network.1} parent=1 // pred_check
      _
    $region3: #{feedforward_network.1} parent=1 // pred_check_branch
      %11 = sbr.rel (0) target = $region5
    $region4: #{feedforward_network.1} parent=1 // pred_region
      _
    $region5: #{feedforward_network.1} parent=1 // pred_fallthru
      _
    // Predicated region
    $region6: #{feedforward_network.1} parent=1 // pred_check
      _
    $region7: #{feedforward_network.1} parent=1 // pred_check_branch
      %13 = sbr.rel (0) target = $region9
    $region8: #{feedforward_network.1} parent=1 // pred_region
      _
    $region9: #{feedforward_network.1} parent=1 // pred_fallthru
      _
    // Predicated region
    $region10: #{feedforward_network.1} parent=1 // pred_check
      _
    $region11: #{feedforward_network.1} parent=1 // pred_check_branch
      %15 = sbr.rel (0) target = $region13
    $region12: #{feedforward_network.1} parent=1 // pred_region
      _
    $region13: #{feedforward_network.1} parent=1 // pred_fallthru
      _
    // Predicated region
    $region14: #{feedforward_network.1} parent=1 // pred_check
      _
    $region15: #{feedforward_network.1} parent=1 // pred_check_branch
      %17 = sbr.rel (0) target = $region17
    $region16: #{feedforward_network.1} parent=1 // pred_region
      _
    $region17: #{feedforward_network.1} parent=1 // pred_fallthru
      _
    %v18 = vld [vmem:[%s0] sm:$0xff]
    %v19 = vld [vmem:[%s0 + $0x8] sm:$0xff]
    %v20 = vld [vmem:[%s3] sm:$0xf]
    %v21 = vld [vmem:[%s1] sm:$0xff]
    %v22 = vld [vmem:[%s1 + $0x8] sm:$0xff]
    %v23 = vld [vmem:[%s1 + $0x10] sm:$0xff]
    %v24 = vld [vmem:[%s1 + $0x18] sm:$0xff]
    %v25 = vlaneseq
    %v26 = vshrl.u32 %v25, 7
    %v27 = vsub.s32 0, %v26
    %v28 = vrot.slane %v20, %v27
    %vm29 = vcmask 261120
    %v31 = vsel %vm29, %v18, 0
    %v34 = vsel %vm29, %v19, 0
    %36 = vmatprep.subr.mxu0 0.0
    %37 = vmatpush1.msra.mxu0 0.0
    %38 = vmatprep.subr.mxu0 0.0
    %39 = vmatpush1.msra.mxu0 0.0
    %40 = vmatprep.subr.mxu0 0.0
    %41 = vmatpush1.msra.mxu0 0.0
    %42 = vmatprep.subr.mxu0 0.0
    %43 = vmatpush1.msra.mxu0 0.0
    %44 = vmatprep.subr.mxu0 0.0
    %45 = vmatpush1.msra.mxu0 0.0
    %46 = vmatprep.subr.mxu0 0.0
    %47 = vmatpush1.msra.mxu0 0.0
    %48 = vmatprep.subr.mxu0 0.0
    %49 = vmatpush1.msra.mxu0 0.0
    %50 = vmatprep.subr.mxu0 0.0
    %51 = vmatpush1.msra.mxu0 0.0
    %52 = vmatprep.subr.mxu0 0.0
    %53 = vmatpush1.msra.mxu0 0.0
    %54 = vmatprep.subr.mxu0 0.0
    %55 = vmatpush1.msra.mxu0 0.0
    %56 = vmatprep.subr.mxu0 0.0
    %57 = vmatpush1.msra.mxu0 0.0
    %58 = vmatprep.subr.mxu0 0.0
    %59 = vmatpush1.msra.mxu0 0.0
    %60 = vmatprep.subr.mxu0 0.0
    %61 = vmatpush1.msra.mxu0 %v24
    %62 = vmatprep.subr.mxu0 0.0
    %63 = vmatpush1.msra.mxu0 %v23
    %64 = vmatprep.subr.mxu0 0.0
    %65 = vmatpush1.msra.mxu0 %v22
    %66 = vmatprep.subr.mxu0 0.0
    %67 = vmatpush1.msra.mxu0 %v21
    %68 = vmatprep.subr.mxu0 0.0
    %69 = vmatpush2.msra.mxu0 0.0
    %70 = vmatprep.subr.mxu0 0.0
    %71 = vmatpush2.msra.mxu0 0.0
    %72 = vmatprep.subr.mxu0 0.0
    %73 = vmatpush2.msra.mxu0 0.0
    %74 = vmatprep.subr.mxu0 0.0
    %75 = vmatpush2.msra.mxu0 0.0
    %76 = vmatprep.subr.mxu0 0.0
    %77 = vmatpush2.msra.mxu0 0.0
    %78 = vmatprep.subr.mxu0 0.0
    %79 = vmatpush2.msra.mxu0 0.0
    %80 = vmatprep.subr.mxu0 0.0
    %81 = vmatpush2.msra.mxu0 0.0
    %82 = vmatprep.subr.mxu0 0.0
    %83 = vmatpush2.msra.mxu0 0.0
    %84 = vmatprep.subr.mxu0 0.0
    %85 = vmatpush2.msra.mxu0 0.0
    %86 = vmatprep.subr.mxu0 0.0
    %87 = vmatpush2.msra.mxu0 0.0
    %88 = vmatprep.subr.mxu0 0.0
    %89 = vmatpush2.msra.mxu0 0.0
    %90 = vmatprep.subr.mxu0 0.0
    %91 = vmatpush2.msra.mxu0 0.0
    %92 = vmatprep.subr.mxu0 0.0
    %93 = vmatpush2.msra.mxu0 0.0
    %94 = vmatprep.subr.mxu0 0.0
    %95 = vmatpush2.msra.mxu0 0.0
    %96 = vmatprep.subr.mxu0 0.0
    %97 = vmatpush2.msra.mxu0 0.0
    %98 = vmatprep.subr.mxu0 0.0
    %99 = vmatpush2.msra.mxu0 0.0
    %100 = vmatprep.mubr.f32.mxu0 0.0
    %101 = vmatmul.mubr.f32.gmra.mxu0 %v31
    %v102 = vpop.f32.mrf.mxu0
    %v103 = vadd.f32 %v28, %v102
    %v104 = vpop.f32.mrf.mxu0
    %105 = vmatprep.mubr.f32.mxu0 0.0
    %106 = vmatmul.mubr.f32.gmra.mxu0 %v34
    %v107 = vpop.f32.mrf.mxu0
    %v108 = vadd.f32 %v28, %v107
    %v109 = vpop.f32.mrf.mxu0
    %110 = vdwg.mxu0
    %v111 = vmax.f32 %v103, 0.0
    %v112 = vmax.f32 %v108, 0.0
    %v113 = vld [vmem:[%s2] sm:$0xff]
    %v114 = vld [vmem:[%s2 + $0x8] sm:$0xff]
    %v115 = vld [vmem:[%s2 + $0x10] sm:$0xff]
    %v116 = vld [vmem:[%s2 + $0x18] sm:$0xff]
    %v117 = vld [vmem:[%s2 + $0x20] sm:$0xff]
    %v118 = vld [vmem:[%s2 + $0x28] sm:$0xff]
    %v119 = vld [vmem:[%s2 + $0x30] sm:$0xff]
    %v120 = vld [vmem:[%s2 + $0x38] sm:$0xff]
    %v121 = vlaneseq
    %v122 = vshrl.u32 %v121, 7
    %v123 = vsub.s32 1, %v122
    %v124 = vrot.slane %v20, %v123
    %vm125 = vcmask 523264
    %v127 = vsel %vm125, %v111, 0
    %v130 = vsel %vm125, %v112, 0
    %132 = vmatprep.subr.mxu0 0.0
    %133 = vmatpush1.msra.mxu0 0.0
    %134 = vmatprep.subr.mxu0 0.0
    %135 = vmatpush1.msra.mxu0 0.0
    %136 = vmatprep.subr.mxu0 0.0
    %137 = vmatpush1.msra.mxu0 0.0
    %138 = vmatprep.subr.mxu0 0.0
    %139 = vmatpush1.msra.mxu0 0.0
    %140 = vmatprep.subr.mxu0 0.0
    %141 = vmatpush1.msra.mxu0 0.0
    %142 = vmatprep.subr.mxu0 0.0
    %143 = vmatpush1.msra.mxu0 0.0
    %144 = vmatprep.subr.mxu0 0.0
    %145 = vmatpush1.msra.mxu0 0.0
    %146 = vmatprep.subr.mxu0 0.0
    %147 = vmatpush1.msra.mxu0 0.0
    %148 = vmatprep.subr.mxu0 0.0
    %149 = vmatpush1.msra.mxu0 %v120
    %150 = vmatprep.subr.mxu0 0.0
    %151 = vmatpush1.msra.mxu0 %v119
    %152 = vmatprep.subr.mxu0 0.0
    %153 = vmatpush1.msra.mxu0 %v118
    %154 = vmatprep.subr.mxu0 0.0
    %155 = vmatpush1.msra.mxu0 %v117
    %156 = vmatprep.subr.mxu0 0.0
    %157 = vmatpush1.msra.mxu0 %v116
    %158 = vmatprep.subr.mxu0 0.0
    %159 = vmatpush1.msra.mxu0 %v115
    %160 = vmatprep.subr.mxu0 0.0
    %161 = vmatpush1.msra.mxu0 %v114
    %162 = vmatprep.subr.mxu0 0.0
    %163 = vmatpush1.msra.mxu0 %v113
    %164 = vmatprep.subr.mxu0 0.0
    %165 = vmatpush2.msra.mxu0 0.0
    %166 = vmatprep.subr.mxu0 0.0
    %167 = vmatpush2.msra.mxu0 0.0
    %168 = vmatprep.subr.mxu0 0.0
    %169 = vmatpush2.msra.mxu0 0.0
    %170 = vmatprep.subr.mxu0 0.0
    %171 = vmatpush2.msra.mxu0 0.0
    %172 = vmatprep.subr.mxu0 0.0
    %173 = vmatpush2.msra.mxu0 0.0
    %174 = vmatprep.subr.mxu0 0.0
    %175 = vmatpush2.msra.mxu0 0.0
    %176 = vmatprep.subr.mxu0 0.0
    %177 = vmatpush2.msra.mxu0 0.0
    %178 = vmatprep.subr.mxu0 0.0
    %179 = vmatpush2.msra.mxu0 0.0
    %180 = vmatprep.subr.mxu0 0.0
    %181 = vmatpush2.msra.mxu0 0.0
    %182 = vmatprep.subr.mxu0 0.0
    %183 = vmatpush2.msra.mxu0 0.0
    %184 = vmatprep.subr.mxu0 0.0
    %185 = vmatpush2.msra.mxu0 0.0
    %186 = vmatprep.subr.mxu0 0.0
    %187 = vmatpush2.msra.mxu0 0.0
    %188 = vmatprep.subr.mxu0 0.0
    %189 = vmatpush2.msra.mxu0 0.0
    %190 = vmatprep.subr.mxu0 0.0
    %191 = vmatpush2.msra.mxu0 0.0
    %192 = vmatprep.subr.mxu0 0.0
    %193 = vmatpush2.msra.mxu0 0.0
    %194 = vmatprep.subr.mxu0 0.0
    %195 = vmatpush2.msra.mxu0 0.0
    %196 = vmatprep.mubr.f32.mxu0 0.0
    %197 = vmatmul.mubr.f32.gmra.mxu0 %v127
    %v198 = vpop.f32.mrf.mxu0
    %v199 = vadd.f32 %v124, %v198
    %v200 = vpop.f32.mrf.mxu0
    %201 = vmatprep.mubr.f32.mxu0 0.0
    %202 = vmatmul.mubr.f32.gmra.mxu0 %v130
    %v203 = vpop.f32.mrf.mxu0
    %v204 = vadd.f32 %v124, %v203
    %v205 = vpop.f32.mrf.mxu0
    %206 = vdwg.mxu0
    %v207 = vadd.f32 %v199, %v18
    %v208 = vadd.f32 %v204, %v19
    %v209 = vsel %vm29, %v207, 0.0
    %210 = vadd.xlane.f32.xlu0 %v209
    %v211 = vpop.xlane.xlu0 %210
    %v212 = vsel %vm29, %v208, 0.0
    %213 = vadd.xlane.f32.xlu0 %v212
    %v214 = vpop.xlane.xlu0 %213
    %v215 = vmul.f32 %v207, %v207
    %v216 = vmul.f32 %v208, %v208
    %v217 = vsel %vm29, %v215, 0.0
    %218 = vadd.xlane.f32.xlu0 %v217
    %v219 = vpop.xlane.xlu0 %218
    %v220 = vsel %vm29, %v216, 0.0
    %221 = vadd.xlane.f32.xlu0 %v220
    %v222 = vpop.xlane.xlu0 %221
    %v223 = vmul.f32 %v211, 0.03125
    %v224 = vmul.f32 %v214, 0.03125
    %v225 = vmul.f32 %v219, 0.03125
    %v226 = vmul.f32 %v222, 0.03125
    %v227 = vmul.f32 %v223, %v223
    %v228 = vmul.f32 %v224, %v224
    %v229 = vsub.f32 %v225, %v227
    %v230 = vsub.f32 %v226, %v228
    %v231 = vsub.f32 %v207, %v223
    %v232 = vsub.f32 %v208, %v224
    %v233 = vadd.f32 %v229, 1e-05
    %v234 = vadd.f32 %v230, 1e-05
    %v235 = vrsqrt.pop %v233
    %v236 = vrsqrt.pop %v234
    %v237 = vmul.f32 %v231, %v235
    %v238 = vmul.f32 %v232, %v236
    %v239 = vlaneseq
    %v240 = vshrl.u32 %v239, 7
    %v241 = vsub.s32 2, %v240
    %v242 = vrot.slane %v20, %v241
    %v243 = vmul.f32 %v237, %v242
    %v244 = vmul.f32 %v238, %v242
    %v245 = vlaneseq
    %v246 = vshrl.u32 %v245, 7
    %v247 = vsub.s32 3, %v246
    %v248 = vrot.slane %v20, %v247
    %v249 = vadd.f32 %v243, %v248
    %v250 = vadd.f32 %v244, %v248
    %251 = vst.msk [vmem:[#allocation2] sm:$0xff] %vm29, %v249
    %252 = vst.msk [vmem:[#allocation2 + $0x8] sm:$0xff] %vm29, %v250
    // Predicated region
    $region18: #{feedforward_network.1} parent=1 // pred_check
      _
    $region19: #{feedforward_network.1} parent=1 // pred_check_branch
      %254 = sbr.rel (0) target = $region21
    $region20: #{feedforward_network.1} parent=1 // pred_region
      %s256 = ssub.s32 256, 256
      %257 = vsyncadd [#allocation3], %s256
      %s258 = sshll.u32 [#allocation2], 4
      %s259 = int_to_ptr.vmem [resolvable:$true] %s258
      %264 = dma.vmem_to_hbm [thread:$0]  %s259, 256, %s4, [#allocation3], 128, 128, 8
    $region21: #{feedforward_network.1} parent=1 // pred_fallthru
      _
    // Predicated region
    $region22: #{feedforward_network.1} parent=1 // pred_check
      _
    $region23: #{feedforward_network.1} parent=1 // pred_check_branch
      %266 = sbr.rel (0) target = $region25
    $region24: #{feedforward_network.1} parent=1 // pred_region
      %267 = dma.done [#allocation3], 256
    $region25: #{feedforward_network.1} parent=1 // pred_fallthru
      _
    %268 = vsyncpa [#allocation3], 1

</llo_original>
